<compile_context>
chip_gen: v5e
topology: v5e:2x2
jax: 0.10.0
libtpu: 0.0.40
codegen_flags: <defaults>
</compile_context>

<pallas_src>
import jax
import jax.numpy as jnp
from jax.experimental import pallas as pl
from jax.experimental.pallas import tpu as pltpu


def _round_up(n, m):
    return ((n + m - 1) // m) * m


def _cdiv(a, b):
    return (a + b - 1) // b


def critic_kernel(x_ref, w1_ref, b1_ref, w2_ref, b2_ref, w3t_ref, b3_ref, o_ref):
    # x streams in as f32; one cheap in-kernel VPU cast gives the MXU its
    # native bf16 operands.  Bias add / ReLU / accumulation stay in f32.
    x = x_ref[...].astype(jnp.bfloat16)                        # (TILE_B, S)

    h1 = jnp.dot(x, w1_ref[...], preferred_element_type=jnp.float32) + b1_ref[...]
    h1 = jnp.maximum(h1, 0.0).astype(jnp.bfloat16)             # (TILE_B, 64)

    h2 = jnp.dot(h1, w2_ref[...], preferred_element_type=jnp.float32) + b2_ref[...]
    h2 = jnp.maximum(h2, 0.0).astype(jnp.bfloat16)             # (TILE_B, 64)

    # Lane-dense epilogue: contract (1,64) with (TILE_B,64) on dim 1 -> (1, TILE_B).
    # TODO(synk): batch-on-lanes orientation for the first two matmuls
    # (w1^T . x^T) would cut vmatmul pushes further; skipped since the kernel
    # is step-overhead / DMA bound at these tile sizes, not MXU bound.
    out_t = jax.lax.dot_general(
        w3t_ref[...], h2,
        dimension_numbers=(((1,), (1,)), ((), ())),
        preferred_element_type=jnp.float32)
    o_ref[...] = (out_t + b3_ref[...]).astype(o_ref.dtype)     # (1, TILE_B)


def critic_forward(x, params, tile_cap=4096):
    """x: [B, state_size] float32 -> [B, 1] float32."""
    w1, b1, w2, b2, w3, b3 = params
    B, S = x.shape

    # Tile sizing: big tiles (multiple of 512 -> lane-dense output stores),
    # capped so >=2 grid steps exist when B is large enough (both TCs on v7x);
    # small B collapses to one full-array block (always a legal block shape).
    if B <= 512:
        tile_b = B
    else:
        tile_b = max(512, min(tile_cap, _round_up(_cdiv(B, 2), 512)))
    num_tiles = _cdiv(B, tile_b)

    # Weights/biases resident in VMEM across all grid steps; weights pre-cast
    # to bf16 once (a few KiB) so every matmul runs bf16-in / f32-accumulate.
    w1b = w1.astype(jnp.bfloat16)
    w2b = w2.astype(jnp.bfloat16)
    w3t = w3.T.astype(jnp.bfloat16)                            # (1, 64)

    def resident(shape):
        # Same block every grid step -> loaded once, stays in VMEM.
        return pl.BlockSpec(shape, lambda i: (0, 0))

    flops = 2 * num_tiles * tile_b * (S * 64 + 64 * 64 + 64)
    bytes_accessed = (B * S * 4 + B * 4
                      + (w1.size + w2.size + w3.size) * 2
                      + (b1.size + b2.size + b3.size) * 4)

    out = pl.pallas_call(
        critic_kernel,
        out_shape=jax.ShapeDtypeStruct((num_tiles, tile_b), jnp.float32),
        grid=(num_tiles,),
        in_specs=[
            # Streamed x tiles (f32, no wrapper-side cast/pad pass).  The
            # ragged last block is masked by Pallas; its padded rows produce
            # garbage outputs that are sliced off below.
            pl.BlockSpec((tile_b, S), lambda i: (i, 0)),
            resident(w1b.shape), resident(b1.shape),
            resident(w2b.shape), resident(b2.shape),
            resident(w3t.shape), resident(b3.shape),
        ],
        out_specs=pl.BlockSpec((1, tile_b), lambda i: (i, 0)),
        compiler_params=pltpu.CompilerParams(
            dimension_semantics=("parallel",),                 # shard batch across TCs
            vmem_limit_bytes=48 * 1024 * 1024,
        ),
        cost_estimate=pl.CostEstimate(
            flops=int(flops), transcendentals=0,
            bytes_accessed=int(bytes_accessed)),
    )(x, w1b, b1, w2b, b2, w3t, b3)

    return out.reshape(num_tiles * tile_b, 1)[:B]


def init_params(key, state_size, dtype=jnp.float32):
    """Deterministic init matching nn.Linear shapes (weights kept as (in, out))."""
    k1, k2, k3, k4, k5, k6 = jax.random.split(key, 6)

    def linear_init(kw, kb, fan_in, fan_out):
        bound = 1.0 / jnp.sqrt(float(fan_in))
        w = jax.random.uniform(kw, (fan_in, fan_out), dtype, -bound, bound)
        b = jax.random.uniform(kb, (1, fan_out), dtype, -bound, bound)
        return w, b

    w1, b1 = linear_init(k1, k2, state_size, 64)
    w2, b2 = linear_init(k3, k4, 64, 64)
    w3, b3 = linear_init(k5, k6, 64, 1)
    return (w1, b1, w2, b2, w3, b3)


def critic_ref_f32(x, params):
    """Pure-f32 reference (the true PyTorch-semantics forward)."""
    w1, b1, w2, b2, w3, b3 = params
    h1 = jnp.maximum(x @ w1 + b1, 0.0)
    h2 = jnp.maximum(h1 @ w2 + b2, 0.0)
    return h2 @ w3 + b3


def critic_ref_bf16(x, params):
    """Reference matching the kernel's precision (bf16 operands, f32 accum)."""
    w1, b1, w2, b2, w3, b3 = params
    f32 = jnp.float32
    bf16 = jnp.bfloat16
    h1 = jnp.dot(x.astype(bf16), w1.astype(bf16), preferred_element_type=f32) + b1
    h1 = jnp.maximum(h1, 0.0)
    h2 = jnp.dot(h1.astype(bf16), w2.astype(bf16), preferred_element_type=f32) + b2
    h2 = jnp.maximum(h2, 0.0)
    return jnp.dot(h2.astype(bf16), w3.astype(bf16), preferred_element_type=f32) + b3


if __name__ == "__main__":
    key = jax.random.PRNGKey(0)
    k_x, k_p, k_x2 = jax.random.split(key, 3)

    state_size = 16
    params = init_params(k_p, state_size)

    # Small case: single full-array block (B=2).
    B = 2
    x = jax.random.normal(k_x, (B, state_size), jnp.float32)
    out = jax.block_until_ready(critic_forward(x, params))
    assert out.shape == (B, 1), out.shape
    assert jnp.allclose(out, critic_ref_bf16(x, params), atol=2e-3, rtol=2e-3)
    assert jnp.allclose(out, critic_ref_f32(x, params), atol=5e-2, rtol=5e-2)

    # Larger case: 2 grid steps (both TCs on v7x) + ragged tail masked by
    # Pallas (B=2000 -> 2 tiles of 1024, no wrapper-side padding of x).
    B2 = 2000
    x2 = jax.random.normal(k_x2, (B2, state_size), jnp.float32)
    out2 = jax.block_until_ready(critic_forward(x2, params))
    assert out2.shape == (B2, 1), out2.shape
    assert jnp.allclose(out2, critic_ref_bf16(x2, params), atol=2e-3, rtol=2e-3)
    assert jnp.allclose(out2, critic_ref_f32(x2, params), atol=5e-2, rtol=5e-2)

    print("KERNEL_OK")
</pallas_src>

<mosaic_0001>
module attributes {stable_mosaic.version = 11 : i64} {
  func.func @critic_kernel(%arg0: i32, %arg1: memref<2x16xf32, #tpu.memory_space<vmem>>, %arg2: memref<16x64xbf16, #tpu.memory_space<vmem>>, %arg3: memref<1x64xf32, #tpu.memory_space<vmem>>, %arg4: memref<64x64xbf16, #tpu.memory_space<vmem>>, %arg5: memref<1x64xf32, #tpu.memory_space<vmem>>, %arg6: memref<1x64xbf16, #tpu.memory_space<vmem>>, %arg7: memref<1x1xf32, #tpu.memory_space<vmem>>, %arg8: memref<1x2xf32, #tpu.memory_space<vmem>>) attributes {dimension_semantics = [#tpu.dimension_semantics<parallel>], iteration_bounds = array<i64: 1>, scalar_prefetch = 0 : i64, scratch_operands = 0 : i64, tpu.core_type = #tpu.core_type<tc>, window_params = [{transform_indices = @transform_0, window_bounds = array<i64: 2, 16>}, {pipeline_mode = #tpu.pipeline_mode<synchronous>, transform_indices = @transform_1, window_bounds = array<i64: 16, 64>}, {pipeline_mode = #tpu.pipeline_mode<synchronous>, transform_indices = @transform_2, window_bounds = array<i64: 1, 64>}, {pipeline_mode = #tpu.pipeline_mode<synchronous>, transform_indices = @transform_3, window_bounds = array<i64: 64, 64>}, {pipeline_mode = #tpu.pipeline_mode<synchronous>, transform_indices = @transform_4, window_bounds = array<i64: 1, 64>}, {pipeline_mode = #tpu.pipeline_mode<synchronous>, transform_indices = @transform_5, window_bounds = array<i64: 1, 64>}, {pipeline_mode = #tpu.pipeline_mode<synchronous>, transform_indices = @transform_6, window_bounds = array<i64: 1, 1>}, {transform_indices = @transform_7, window_bounds = array<i64: 1, 2>}]} {
    %c0 = arith.constant 0 : index
    %c0_0 = arith.constant 0 : index
    %0 = vector.load %arg1[%c0, %c0_0] : memref<2x16xf32, #tpu.memory_space<vmem>>, vector<2x16xf32>
    %1 = arith.truncf %0 : vector<2x16xf32> to vector<2x16xbf16>
    %c0_1 = arith.constant 0 : index
    %c0_2 = arith.constant 0 : index
    %2 = vector.load %arg2[%c0_1, %c0_2] : memref<16x64xbf16, #tpu.memory_space<vmem>>, vector<16x64xbf16>
    %cst = arith.constant dense<0.000000e+00> : vector<2x64xf32>
    %3 = tpu.matmul %1, %2, %cst {dimension_numbers = #tpu.dot_dimension_numbers<[1], [0], [0], [1], [0, 0, 1, 1], [], []>} : vector<2x16xbf16>, vector<16x64xbf16>, vector<2x64xf32> -> vector<2x64xf32>
    %c0_3 = arith.constant 0 : index
    %c0_4 = arith.constant 0 : index
    %4 = vector.load %arg3[%c0_3, %c0_4] : memref<1x64xf32, #tpu.memory_space<vmem>>, vector<1x64xf32>
    %5 = vector.broadcast %4 : vector<1x64xf32> to vector<2x64xf32>
    %6 = arith.addf %3, %5 : vector<2x64xf32>
    %cst_5 = arith.constant 0.000000e+00 : f32
    %7 = vector.broadcast %cst_5 : f32 to vector<2x64xf32>
    %8 = arith.maximumf %6, %7 : vector<2x64xf32>
    %9 = arith.truncf %8 : vector<2x64xf32> to vector<2x64xbf16>
    %c0_6 = arith.constant 0 : index
    %c0_7 = arith.constant 0 : index
    %10 = vector.load %arg4[%c0_6, %c0_7] : memref<64x64xbf16, #tpu.memory_space<vmem>>, vector<64x64xbf16>
    %cst_8 = arith.constant dense<0.000000e+00> : vector<2x64xf32>
    %11 = tpu.matmul %9, %10, %cst_8 {dimension_numbers = #tpu.dot_dimension_numbers<[1], [0], [0], [1], [0, 0, 1, 1], [], []>} : vector<2x64xbf16>, vector<64x64xbf16>, vector<2x64xf32> -> vector<2x64xf32>
    %c0_9 = arith.constant 0 : index
    %c0_10 = arith.constant 0 : index
    %12 = vector.load %arg5[%c0_9, %c0_10] : memref<1x64xf32, #tpu.memory_space<vmem>>, vector<1x64xf32>
    %13 = vector.broadcast %12 : vector<1x64xf32> to vector<2x64xf32>
    %14 = arith.addf %11, %13 : vector<2x64xf32>
    %cst_11 = arith.constant 0.000000e+00 : f32
    %15 = vector.broadcast %cst_11 : f32 to vector<2x64xf32>
    %16 = arith.maximumf %14, %15 : vector<2x64xf32>
    %17 = arith.truncf %16 : vector<2x64xf32> to vector<2x64xbf16>
    %c0_12 = arith.constant 0 : index
    %c0_13 = arith.constant 0 : index
    %18 = vector.load %arg6[%c0_12, %c0_13] : memref<1x64xbf16, #tpu.memory_space<vmem>>, vector<1x64xbf16>
    %cst_14 = arith.constant dense<0.000000e+00> : vector<1x2xf32>
    %19 = tpu.matmul %18, %17, %cst_14 {dimension_numbers = #tpu.dot_dimension_numbers<[1], [1], [0], [0], [0, 0, 1, 0], [], []>} : vector<1x64xbf16>, vector<2x64xbf16>, vector<1x2xf32> -> vector<1x2xf32>
    %c0_15 = arith.constant 0 : index
    %c0_16 = arith.constant 0 : index
    %20 = vector.load %arg7[%c0_15, %c0_16] : memref<1x1xf32, #tpu.memory_space<vmem>>, vector<1x1xf32>
    %21 = vector.broadcast %20 : vector<1x1xf32> to vector<1x2xf32>
    %22 = arith.addf %19, %21 : vector<1x2xf32>
    %c0_17 = arith.constant 0 : index
    %c0_18 = arith.constant 0 : index
    %23 = vector.load %arg8[%c0_17, %c0_18] : memref<1x2xf32, #tpu.memory_space<vmem>>, vector<1x2xf32>
    tpu.vector_store %arg8[%c0_17, %c0_18], %22 {strides = array<i32>} : memref<1x2xf32, #tpu.memory_space<vmem>>, vector<1x2xf32>,
    return
  }
  func.func @transform_0(%arg0: i32) -> (i32, i32) {
    %c0_i32 = arith.constant 0 : i32
    %c0_i32_0 = arith.constant 0 : i32
    return %arg0, %c0_i32 : i32, i32
  }
  func.func @transform_1(%arg0: i32) -> (i32, i32) {
    %c0_i32 = arith.constant 0 : i32
    %c0_i32_0 = arith.constant 0 : i32
    %c0_i32_1 = arith.constant 0 : i32
    return %c0_i32, %c0_i32_0 : i32, i32
  }
  func.func @transform_2(%arg0: i32) -> (i32, i32) {
    %c0_i32 = arith.constant 0 : i32
    %c0_i32_0 = arith.constant 0 : i32
    %c0_i32_1 = arith.constant 0 : i32
    return %c0_i32, %c0_i32_0 : i32, i32
  }
  func.func @transform_3(%arg0: i32) -> (i32, i32) {
    %c0_i32 = arith.constant 0 : i32
    %c0_i32_0 = arith.constant 0 : i32
    %c0_i32_1 = arith.constant 0 : i32
    return %c0_i32, %c0_i32_0 : i32, i32
  }
  func.func @transform_4(%arg0: i32) -> (i32, i32) {
    %c0_i32 = arith.constant 0 : i32
    %c0_i32_0 = arith.constant 0 : i32
    %c0_i32_1 = arith.constant 0 : i32
    return %c0_i32, %c0_i32_0 : i32, i32
  }
  func.func @transform_5(%arg0: i32) -> (i32, i32) {
    %c0_i32 = arith.constant 0 : i32
    %c0_i32_0 = arith.constant 0 : i32
    %c0_i32_1 = arith.constant 0 : i32
    return %c0_i32, %c0_i32_0 : i32, i32
  }
  func.func @transform_6(%arg0: i32) -> (i32, i32) {
    %c0_i32 = arith.constant 0 : i32
    %c0_i32_0 = arith.constant 0 : i32
    %c0_i32_1 = arith.constant 0 : i32
    return %c0_i32, %c0_i32_0 : i32, i32
  }
  func.func @transform_7(%arg0: i32) -> (i32, i32) {
    %c0_i32 = arith.constant 0 : i32
    %c0_i32_0 = arith.constant 0 : i32
    return %arg0, %c0_i32 : i32, i32
  }
}

</mosaic_0001>

<llo_original>
// kernel: tpu_custom_call.1
$region0: #{tpu_custom_call.1}
  #allocation0 [shape = 'u32[]', space=smem, size = 0x4, offset = 0x4, fixed_abs, tag = 'smem constant byte address 0x4 - core index']
  #allocation1 [shape = 'u32[72,128]{1,0:T(1,128)}', space=vmem, size = 0x9000, scoped, tag = 'internal scratch']
  #allocation2 [shape = 'f32[1,1]{1,0:T(1,128)S(1)}', space=vmem, size = 0x200, scoped, tag = 'scoped memory for tpu_custom_call.1']
  %s0 = inlined_call_operand.vmem [shape: f32[2,16], index: 0, kind: input, shape index: {}]
  %s1 = inlined_call_operand.hbm [shape: bf16[16,64], index: 1, kind: input, shape index: {}]
  %s2 = inlined_call_operand.vmem [shape: f32[1,64], index: 2, kind: input, shape index: {}]
  %s3 = inlined_call_operand.hbm [shape: bf16[64,64], index: 3, kind: input, shape index: {}]
  %s4 = inlined_call_operand.vmem [shape: f32[1,64], index: 4, kind: input, shape index: {}]
  %s5 = inlined_call_operand.vmem [shape: bf16[1,64], index: 5, kind: input, shape index: {}]
  %s6 = inlined_call_operand.<no memory space> [shape: f32[1,1], index: 6, kind: input, shape index: {}]
  %s7 = inlined_call_operand.hbm [shape: f32[1,2], index: 7, kind: output, shape index: {}]
  %s8 = sld [smem:[#allocation0]]
  $region46: #{tpu_custom_call.1} parent=0
    _
  %s10 = ssub.s32 1, %s8
  %s11 = scalar_select 0, %s10, %s8
  %v12 = vstv %s6
  %13 = vst [vmem:[#allocation2] sm:$0x1] %v12
  $region1: #{tpu_custom_call.1} parent=0
    #allocation3 [shape = 'u8[4096]{0}', space=vmem, size = 0x1000, scoped, tag = 'input window, operand 1, single buffered']
    #allocation4 [shape = 's32[1]{0}', space=sflag, size = 0x4, scoped, tag = 'scoped memory for tpu_custom_call.1']
    #allocation5 [shape = 's32[1]{0}', space=sflag, size = 0x4, scoped, tag = 'scoped memory for tpu_custom_call.1']
    #allocation6 [shape = 'u8[16384]{0}', space=vmem, size = 0x4000, scoped, tag = 'input window, operand 3, single buffered']
    #allocation7 [shape = 's32[1]{0}', space=sflag, size = 0x4, scoped, tag = 'scoped memory for tpu_custom_call.1']
    #allocation8 [shape = 'u8[512]{0}', space=vmem, size = 0x400, scoped, tag = 'output window, operand 0, single buffered']
    %14 = vsyncpa [#allocation4], 0
    %15 = vsyncpa [#allocation7], 0
    %16 = vsyncpa [#allocation5], 0
    // Predicated region
    $region2: #{tpu_custom_call.1} parent=1 // pred_check
      _
    $region3: #{tpu_custom_call.1} parent=1 // pred_check_branch
      %18 = sbr.rel (0) target = $region5
    $region4: #{tpu_custom_call.1} parent=1 // pred_region
      _
    $region5: #{tpu_custom_call.1} parent=1 // pred_fallthru
      _
    // Predicated region
    $region6: #{tpu_custom_call.1} parent=1 // pred_check
      _
    $region7: #{tpu_custom_call.1} parent=1 // pred_check_branch
      %20 = sbr.rel (0) target = $region9
    $region8: #{tpu_custom_call.1} parent=1 // pred_region
      %22 = vsyncadd [#allocation4], 0
      %s23 = sshll.u32 %s1, 4
      %s24 = int_to_ptr.hbm [resolvable:$true] %s23
      %s25 = sshll.u32 [#allocation3], 4
      %s26 = int_to_ptr.vmem [resolvable:$true] %s25
      %31 = dma.hbm_to_vmem [thread:$0]  %s24, 128, %s26, [#allocation4], 64, 64, 4
    $region9: #{tpu_custom_call.1} parent=1 // pred_fallthru
      _
    // Predicated region
    $region10: #{tpu_custom_call.1} parent=1 // pred_check
      _
    $region11: #{tpu_custom_call.1} parent=1 // pred_check_branch
      %33 = sbr.rel (0) target = $region13
    $region12: #{tpu_custom_call.1} parent=1 // pred_region
      _
    $region13: #{tpu_custom_call.1} parent=1 // pred_fallthru
      _
    // Predicated region
    $region14: #{tpu_custom_call.1} parent=1 // pred_check
      _
    $region15: #{tpu_custom_call.1} parent=1 // pred_check_branch
      %35 = sbr.rel (0) target = $region17
    $region16: #{tpu_custom_call.1} parent=1 // pred_region
      %37 = vsyncadd [#allocation7], 0
      %s38 = sshll.u32 %s3, 4
      %s39 = int_to_ptr.hbm [resolvable:$true] %s38
      %s40 = sshll.u32 [#allocation6], 4
      %s41 = int_to_ptr.vmem [resolvable:$true] %s40
      %46 = dma.hbm_to_vmem [thread:$0]  %s39, 512, %s41, [#allocation7], 64, 64, 4
    $region17: #{tpu_custom_call.1} parent=1 // pred_fallthru
      _
    // Predicated region
    $region18: #{tpu_custom_call.1} parent=1 // pred_check
      _
    $region19: #{tpu_custom_call.1} parent=1 // pred_check_branch
      %48 = sbr.rel (0) target = $region21
    $region20: #{tpu_custom_call.1} parent=1 // pred_region
      _
    $region21: #{tpu_custom_call.1} parent=1 // pred_fallthru
      _
    // Predicated region
    $region22: #{tpu_custom_call.1} parent=1 // pred_check
      _
    $region23: #{tpu_custom_call.1} parent=1 // pred_check_branch
      %50 = sbr.rel (0) target = $region25
    $region24: #{tpu_custom_call.1} parent=1 // pred_region
      _
    $region25: #{tpu_custom_call.1} parent=1 // pred_fallthru
      _
    // Predicated region
    $region26: #{tpu_custom_call.1} parent=1 // pred_check
      _
    $region27: #{tpu_custom_call.1} parent=1 // pred_check_branch
      %52 = sbr.rel (0) target = $region29
    $region28: #{tpu_custom_call.1} parent=1 // pred_region
      _
    $region29: #{tpu_custom_call.1} parent=1 // pred_fallthru
      _
    // Predicated region
    $region30: #{tpu_custom_call.1} parent=1 // pred_check
      _
    $region31: #{tpu_custom_call.1} parent=1 // pred_check_branch
      %54 = sbr.rel (0) target = $region33
    $region32: #{tpu_custom_call.1} parent=1 // pred_region
      %56 = dma.done [#allocation4], 128
    $region33: #{tpu_custom_call.1} parent=1 // pred_fallthru
      _
    // Predicated region
    $region34: #{tpu_custom_call.1} parent=1 // pred_check
      _
    $region35: #{tpu_custom_call.1} parent=1 // pred_check_branch
      %58 = sbr.rel (0) target = $region37
    $region36: #{tpu_custom_call.1} parent=1 // pred_region
      %60 = dma.done [#allocation7], 512
    $region37: #{tpu_custom_call.1} parent=1 // pred_fallthru
      _
    %v62 = vld [vmem:[%s0] sm:$0x3]
    %v63 = vpack.c.bf16 %v62, %v62
    %v64 = vld [vmem:[#allocation3] sm:$0xf]
    %v65 = vld [vmem:[#allocation3 + $0x4] sm:$0xf]
    %v66 = vld [vmem:[%s2] sm:$0x1]
    %v68 = vperm.slane %v66, 0
    %v72 = vunpack.c.l.b16 %v64
    %v73 = vunpack.c.l.b16 %v65
    %v74 = vpack.c.b16 %v73, %v72
    %vm76 = vcmask 130048
    %v78 = vsel %vm76, %v63, 0
    %80 = vmatpush.bf16.msra.mxu0 0
    %81 = vmatpush.bf16.msra.mxu0 0
    %82 = vmatpush.bf16.msra.mxu0 0
    %83 = vmatpush.bf16.msra.mxu0 0
    %84 = vmatpush.bf16.msra.mxu0 0
    %85 = vmatpush.bf16.msra.mxu0 0
    %86 = vmatpush.bf16.msra.mxu0 0
    %87 = vmatpush.bf16.msra.mxu0 %v74
    %88 = vmatmul.bf16.gmra.mxu0 %v78
    %v89 = vpop.f32.mrf.mxu0
    %v90 = vadd.f32 %v68, %v89
    %v91 = vpop.f32.mrf.mxu0
    %92 = vdwg.mxu0
    %v93 = vmax.f32 %v90, 0.0
    %v94 = vpack.c.bf16 %v93, %v93
    %v95 = vld [vmem:[#allocation6] sm:$0xf]
    %v96 = vld [vmem:[#allocation6 + $0x4] sm:$0xf]
    %v97 = vld [vmem:[#allocation6 + $0x8] sm:$0xf]
    %v98 = vld [vmem:[#allocation6 + $0xc] sm:$0xf]
    %v99 = vld [vmem:[#allocation6 + $0x10] sm:$0xf]
    %v100 = vld [vmem:[#allocation6 + $0x14] sm:$0xf]
    %v101 = vld [vmem:[#allocation6 + $0x18] sm:$0xf]
    %v102 = vld [vmem:[#allocation6 + $0x1c] sm:$0xf]
    %v103 = vld [vmem:[%s4] sm:$0x1]
    %v105 = vperm.slane %v103, 0
    %v115 = vunpack.c.l.b16 %v95
    %v116 = vunpack.c.l.b16 %v96
    %v117 = vunpack.c.l.b16 %v97
    %v118 = vunpack.c.l.b16 %v98
    %v119 = vunpack.c.l.b16 %v99
    %v120 = vunpack.c.l.b16 %v100
    %v121 = vunpack.c.l.b16 %v101
    %v122 = vunpack.c.l.b16 %v102
    %v123 = vpack.c.b16 %v116, %v115
    %v124 = vpack.c.b16 %v118, %v117
    %v125 = vpack.c.b16 %v120, %v119
    %v126 = vpack.c.b16 %v122, %v121
    %vm131 = vcmask 523264
    %v133 = vsel %vm131, %v94, 0
    %135 = vmatpush.bf16.msra.mxu0 0
    %136 = vmatpush.bf16.msra.mxu0 0
    %137 = vmatpush.bf16.msra.mxu0 0
    %138 = vmatpush.bf16.msra.mxu0 0
    %139 = vmatpush.bf16.msra.mxu0 %v126
    %140 = vmatpush.bf16.msra.mxu0 %v125
    %141 = vmatpush.bf16.msra.mxu0 %v124
    %142 = vmatpush.bf16.msra.mxu0 %v123
    %143 = vmatmul.bf16.gmra.mxu0 %v133
    %v144 = vpop.f32.mrf.mxu0
    %v145 = vadd.f32 %v105, %v144
    %v146 = vpop.f32.mrf.mxu0
    %147 = vdwg.mxu0
    %v148 = vmax.f32 %v145, 0.0
    %v149 = vpack.c.bf16 %v148, %v148
    %v150 = vld [vmem:[%s5] sm:$0x1]
    %v151 = vld [vmem:[#allocation2] sm:$0x1]
    %153 = vset.pattern.permute.xlu0 0
    %154 = vperm.xlu0 %153, %v151
    %v155 = vpop.permute.xlu0 %154
    %v157 = vperm.slane %v155, 0
    %v159 = vsel %vm131, %v150, 0
    %v162 = vsel %vm131, %v149, 0
    %164 = vmatpush.bf16.xpose.msra.mxu0 0
    %165 = vmatpush.bf16.xpose.msra.mxu0 0
    %166 = vmatpush.bf16.xpose.msra.mxu0 0
    %167 = vmatpush.bf16.xpose.msra.mxu0 0
    %168 = vmatpush.bf16.xpose.msra.mxu0 0
    %169 = vmatpush.bf16.xpose.msra.mxu0 0
    %170 = vmatpush.bf16.xpose.msra.mxu0 0
    %171 = vmatpush.bf16.xpose.msra.mxu0 %v162
    %172 = vmatmul.bf16.gmra.mxu0 %v159
    %v173 = vpop.f32.mrf.mxu0
    %v174 = vadd.f32 %v157, %v173
    %v175 = vpop.f32.mrf.mxu0
    %176 = vdwg.mxu0
    %vm177 = vcmask 8192
    %178 = vst.msk [vmem:[#allocation8] sm:$0x1] %vm177, %v174
    // Predicated region
    $region38: #{tpu_custom_call.1} parent=1 // pred_check
      _
    $region39: #{tpu_custom_call.1} parent=1 // pred_check_branch
      %180 = sbr.rel (0) target = $region41
    $region40: #{tpu_custom_call.1} parent=1 // pred_region
      %182 = vsyncadd [#allocation5], 0
      %s184 = sshll.u32 [#allocation8], 4
      %s185 = int_to_ptr.vmem [resolvable:$true] %s184
      %s186 = sshll.u32 %s7, 4
      %s187 = int_to_ptr.hbm [resolvable:$true] %s186
      %189 = dma.vmem_to_hbm [thread:$0]  %s185, 16, %s187, [#allocation5]
    $region41: #{tpu_custom_call.1} parent=1 // pred_fallthru
      _
    // Predicated region
    $region42: #{tpu_custom_call.1} parent=1 // pred_check
      _
    $region43: #{tpu_custom_call.1} parent=1 // pred_check_branch
      %191 = sbr.rel (0) target = $region45
    $region44: #{tpu_custom_call.1} parent=1 // pred_region
      %193 = dma.done [#allocation5], 16
    $region45: #{tpu_custom_call.1} parent=1 // pred_fallthru
      _
    %194 = vsyncpa [#allocation4], 1
    %195 = vsyncpa [#allocation7], 1
    %196 = vsyncpa [#allocation5], 1

</llo_original>
